<compile_context>
chip_gen: v6e
topology: v6e:2x2x1
jax: 0.10.0
libtpu: 0.0.40
codegen_flags: <defaults>
</compile_context>

<pallas_src>
import functools

import jax
import jax.numpy as jnp
from jax.experimental import pallas as pl
from jax.experimental.pallas import tpu as pltpu


def _groupnorm_kernel(x_ref, gamma_ref, beta_ref, o_ref, *, group, rpg, eps, count):
    # x block: (BS, R, L) with R = group * rpg rows on the sublane axis and L
    # lane-dense columns.  gamma/beta block: (R, 1) (per-channel path) or
    # (R, L) (lane-packed small-spatial path); both broadcast against x.
    x = x_ref[...].astype(jnp.float32)
    bs, r, _ = x.shape

    # --- single stats pass: lane reductions, combined on tiny (BS, R) arrays ---
    row_sum = jnp.sum(x, axis=-1)                                  # (BS, R)
    row_sq = jnp.sum(x * x, axis=-1)                               # (BS, R)
    g_sum = jnp.sum(row_sum.reshape(bs, group, rpg), axis=-1)      # (BS, G)
    g_sq = jnp.sum(row_sq.reshape(bs, group, rpg), axis=-1)        # (BS, G)

    mean_g = g_sum * (1.0 / count)                                 # (BS, G)
    # sum((x - mean)^2) == sum(x^2) - sum(x) * mean; clamp tiny negatives from
    # f32 cancellation.  torch.var default is unbiased -> divide by count - 1.
    ss_g = jnp.maximum(g_sq - g_sum * mean_g, 0.0)
    var_g = ss_g * (1.0 / float(max(count - 1, 1)))
    inv_g = jax.lax.rsqrt(var_g + eps)                             # (BS, G)

    # Broadcast per-group stats back to per-row (BS, R, 1).
    mean_r = jnp.broadcast_to(mean_g[:, :, None], (bs, group, rpg)).reshape(bs, r)[:, :, None]
    inv_r = jnp.broadcast_to(inv_g[:, :, None], (bs, group, rpg)).reshape(bs, r)[:, :, None]

    gamma = gamma_ref[...].astype(jnp.float32)                     # resident
    beta = beta_ref[...].astype(jnp.float32)                       # resident
    scale = inv_r * gamma
    shift = beta - mean_r * scale

    # Single fused output pass; no full-size diff / x_hat temporaries.
    o_ref[...] = (x * scale + shift).astype(o_ref.dtype)


def group_norm(x, gamma, beta, *, group=4, eps=1e-5, block_bytes=4 << 20,
               vmem_limit_bytes=48 << 20):
    N, C, H, W = x.shape
    assert C % group == 0
    cg = C // group
    hw = H * W
    count = cg * hw

    # Layout: keep the lane axis >= 128 wide.  For small-spatial stages
    # (hw < 128, e.g. the 7x7 ResNet stage) pack the whole group onto the lane
    # axis; otherwise channels go on sublanes / spatial on lanes.
    lane_pack = hw < 128
    if lane_pack:
        rpg = 1
        R, L = group, cg * hw
        x2 = x.reshape(N, R, L)
        gamma2 = jnp.broadcast_to(gamma.reshape(group, cg, 1), (group, cg, hw)).reshape(R, L)
        beta2 = jnp.broadcast_to(beta.reshape(group, cg, 1), (group, cg, hw)).reshape(R, L)
    else:
        rpg = cg
        R, L = C, hw
        x2 = x.reshape(N, R, L)
        gamma2 = gamma.reshape(C, 1)
        beta2 = beta.reshape(C, 1)

    # Samples per grid step: as big as the block budget allows, but aim for
    # >= 4 grid steps when N permits so each v7x TensorCore gets >= 2 steps to
    # pipeline DMA behind compute; bs divides N so stats never see padded rows.
    per_sample_bytes = C * hw * x.dtype.itemsize
    budget_bs = max(1, block_bytes // max(per_sample_bytes, 1))
    max_bs = int(max(1, min(budget_bs, max(1, N // 4), N)))
    bs = 1
    for cand in range(max_bs, 0, -1):
        if N % cand == 0:
            bs = cand
            break

    kernel = functools.partial(
        _groupnorm_kernel, group=group, rpg=rpg, eps=float(eps), count=count
    )

    cost = pl.CostEstimate(
        flops=6 * N * C * hw,
        transcendentals=N * group,
        bytes_accessed=2 * N * C * hw * x.dtype.itemsize
        + 2 * int(gamma2.size) * gamma.dtype.itemsize,
    )

    out = pl.pallas_call(
        kernel,
        out_shape=jax.ShapeDtypeStruct((N, R, L), x.dtype),
        grid=(N // bs,),
        in_specs=[
            pl.BlockSpec((bs, R, L), lambda n: (n, 0, 0)),
            # Full gamma/beta with a constant block index -> fetched once, resident.
            pl.BlockSpec(gamma2.shape, lambda n: (0, 0)),
            pl.BlockSpec(beta2.shape, lambda n: (0, 0)),
        ],
        out_specs=pl.BlockSpec((bs, R, L), lambda n: (n, 0, 0)),
        compiler_params=pltpu.CompilerParams(
            dimension_semantics=("parallel",),
            vmem_limit_bytes=vmem_limit_bytes,
        ),
        cost_estimate=cost,
    )(x2, gamma2, beta2)

    return out.reshape(N, C, H, W)


def group_norm_ref(x, gamma, beta, *, group=4, eps=1e-5):
    # Pure-JAX reference mirroring the PyTorch forward exactly.
    N, C, H, W = x.shape
    cg = C // group
    xg = x.reshape(N, group, cg, H, W).astype(jnp.float32)
    mean = jnp.mean(xg, axis=(2, 3, 4), keepdims=True)
    var = jnp.sum((xg - mean) ** 2, axis=(2, 3, 4), keepdims=True) / (cg * H * W - 1)
    xh = (xg - mean) / jnp.sqrt(var + eps)
    xh = xh.reshape(N, C, H, W)
    return (xh * gamma + beta).astype(x.dtype)


if __name__ == "__main__":
    key = jax.random.PRNGKey(0)
    k1, k2, k3, k4 = jax.random.split(key, 4)
    eps = 1e-5

    # Primary check: module defaults (num_features=4, group=4), 16x16 spatial.
    num_features, group = 4, 4
    gamma = jnp.ones((1, num_features, 1, 1), dtype=jnp.float32)   # _param_init
    beta = jnp.zeros((1, num_features, 1, 1), dtype=jnp.float32)
    x = jax.random.normal(k1, (2, num_features, 16, 16), dtype=jnp.float32)

    out = jax.block_until_ready(group_norm(x, gamma, beta, group=group, eps=eps))
    ref = group_norm_ref(x, gamma, beta, group=group, eps=eps)
    assert out.shape == x.shape and out.dtype == x.dtype
    assert jnp.allclose(out, ref, atol=1e-5, rtol=1e-5), "mismatch (main path)"

    # Secondary check: lane-packed small-spatial path (hw = 7*7 < 128) with
    # non-trivial affine params.
    C2, group2 = 8, 4
    gamma_b = jax.random.normal(k2, (1, C2, 1, 1), dtype=jnp.float32)
    beta_b = jax.random.normal(k3, (1, C2, 1, 1), dtype=jnp.float32)
    x_b = jax.random.normal(k4, (2, C2, 7, 7), dtype=jnp.float32)

    out_b = jax.block_until_ready(group_norm(x_b, gamma_b, beta_b, group=group2, eps=eps))
    ref_b = group_norm_ref(x_b, gamma_b, beta_b, group=group2, eps=eps)
    assert out_b.shape == x_b.shape and out_b.dtype == x_b.dtype
    assert jnp.allclose(out_b, ref_b, atol=1e-5, rtol=1e-5), "mismatch (lane-packed path)"

    print("KERNEL_OK")
</pallas_src>

<mosaic_0001>
module attributes {stable_mosaic.version = 11 : i64} {
  func.func @_groupnorm_kernel(%arg0: i32, %arg1: memref<1x4x256xf32, #tpu.memory_space<vmem>>, %arg2: memref<4x1xf32, #tpu.memory_space<vmem>>, %arg3: memref<4x1xf32, #tpu.memory_space<vmem>>, %arg4: memref<1x4x256xf32, #tpu.memory_space<vmem>>) attributes {dimension_semantics = [#tpu.dimension_semantics<parallel>], iteration_bounds = array<i64: 2>, scalar_prefetch = 0 : i64, scratch_operands = 0 : i64, tpu.core_type = #tpu.core_type<tc>, window_params = [{transform_indices = @transform_0, window_bounds = array<i64: 1, 4, 256>}, {pipeline_mode = #tpu.pipeline_mode<synchronous>, transform_indices = @transform_1, window_bounds = array<i64: 4, 1>}, {pipeline_mode = #tpu.pipeline_mode<synchronous>, transform_indices = @transform_2, window_bounds = array<i64: 4, 1>}, {transform_indices = @transform_3, window_bounds = array<i64: 1, 4, 256>}]} {
    %c0 = arith.constant 0 : index
    %c0_0 = arith.constant 0 : index
    %c0_1 = arith.constant 0 : index
    %0 = vector.load %arg1[%c0, %c0_0, %c0_1] : memref<1x4x256xf32, #tpu.memory_space<vmem>>, vector<1x4x256xf32>
    %cst = arith.constant dense<0.000000e+00> : vector<1x4xf32>
    %1 = vector.multi_reduction <add>, %0, %cst [2] : vector<1x4x256xf32> to vector<1x4xf32>
    %2 = arith.mulf %0, %0 : vector<1x4x256xf32>
    %cst_2 = arith.constant dense<0.000000e+00> : vector<1x4xf32>
    %3 = vector.multi_reduction <add>, %2, %cst_2 [2] : vector<1x4x256xf32> to vector<1x4xf32>
    %4 = vector.shape_cast %1 : vector<1x4xf32> to vector<1x4x1xf32>
    %cst_3 = arith.constant dense<0.000000e+00> : vector<1x4xf32>
    %5 = vector.multi_reduction <add>, %4, %cst_3 [2] : vector<1x4x1xf32> to vector<1x4xf32>
    %6 = vector.shape_cast %3 : vector<1x4xf32> to vector<1x4x1xf32>
    %cst_4 = arith.constant dense<0.000000e+00> : vector<1x4xf32>
    %7 = vector.multi_reduction <add>, %6, %cst_4 [2] : vector<1x4x1xf32> to vector<1x4xf32>
    %cst_5 = arith.constant 3.906250e-03 : f32
    %8 = vector.broadcast %cst_5 : f32 to vector<1x4xf32>
    %9 = arith.mulf %5, %8 : vector<1x4xf32>
    %10 = arith.mulf %5, %9 : vector<1x4xf32>
    %11 = arith.subf %7, %10 : vector<1x4xf32>
    %cst_6 = arith.constant 0.000000e+00 : f32
    %12 = vector.broadcast %cst_6 : f32 to vector<1x4xf32>
    %13 = arith.maximumf %11, %12 : vector<1x4xf32>
    %cst_7 = arith.constant 0.00392156886 : f32
    %14 = vector.broadcast %cst_7 : f32 to vector<1x4xf32>
    %15 = arith.mulf %13, %14 : vector<1x4xf32>
    %cst_8 = arith.constant 9.99999974E-6 : f32
    %16 = vector.broadcast %cst_8 : f32 to vector<1x4xf32>
    %17 = arith.addf %15, %16 : vector<1x4xf32>
    %18 = math.rsqrt %17 : vector<1x4xf32>
    %19 = vector.shape_cast %9 : vector<1x4xf32> to vector<1x4x1xf32>
    %20 = vector.shape_cast %19 : vector<1x4x1xf32> to vector<1x4xf32>
    %21 = vector.shape_cast %20 : vector<1x4xf32> to vector<1x4x1xf32>
    %22 = vector.shape_cast %18 : vector<1x4xf32> to vector<1x4x1xf32>
    %23 = vector.shape_cast %22 : vector<1x4x1xf32> to vector<1x4xf32>
    %24 = vector.shape_cast %23 : vector<1x4xf32> to vector<1x4x1xf32>
    %c0_9 = arith.constant 0 : index
    %c0_10 = arith.constant 0 : index
    %25 = vector.load %arg2[%c0_9, %c0_10] : memref<4x1xf32, #tpu.memory_space<vmem>>, vector<4x1xf32>
    %c0_11 = arith.constant 0 : index
    %c0_12 = arith.constant 0 : index
    %26 = vector.load %arg3[%c0_11, %c0_12] : memref<4x1xf32, #tpu.memory_space<vmem>>, vector<4x1xf32>
    %27 = vector.shape_cast %25 : vector<4x1xf32> to vector<1x4x1xf32>
    %28 = arith.mulf %24, %27 : vector<1x4x1xf32>
    %29 = arith.mulf %21, %28 : vector<1x4x1xf32>
    %30 = vector.shape_cast %26 : vector<4x1xf32> to vector<1x4x1xf32>
    %31 = arith.subf %30, %29 : vector<1x4x1xf32>
    %32 = vector.broadcast %28 : vector<1x4x1xf32> to vector<1x4x256xf32>
    %33 = arith.mulf %0, %32 : vector<1x4x256xf32>
    %34 = vector.broadcast %31 : vector<1x4x1xf32> to vector<1x4x256xf32>
    %35 = arith.addf %33, %34 : vector<1x4x256xf32>
    %c0_13 = arith.constant 0 : index
    %c0_14 = arith.constant 0 : index
    %c0_15 = arith.constant 0 : index
    %36 = vector.load %arg4[%c0_13, %c0_14, %c0_15] : memref<1x4x256xf32, #tpu.memory_space<vmem>>, vector<1x4x256xf32>
    tpu.vector_store %arg4[%c0_13, %c0_14, %c0_15], %35 {strides = array<i32>} : memref<1x4x256xf32, #tpu.memory_space<vmem>>, vector<1x4x256xf32>,
    return
  }
  func.func @transform_0(%arg0: i32) -> (i32, i32, i32) {
    %c0_i32 = arith.constant 0 : i32
    %c0_i32_0 = arith.constant 0 : i32
    %c0_i32_1 = arith.constant 0 : i32
    return %arg0, %c0_i32, %c0_i32_0 : i32, i32, i32
  }
  func.func @transform_1(%arg0: i32) -> (i32, i32) {
    %c0_i32 = arith.constant 0 : i32
    %c0_i32_0 = arith.constant 0 : i32
    %c0_i32_1 = arith.constant 0 : i32
    return %c0_i32, %c0_i32_0 : i32, i32
  }
  func.func @transform_2(%arg0: i32) -> (i32, i32) {
    %c0_i32 = arith.constant 0 : i32
    %c0_i32_0 = arith.constant 0 : i32
    %c0_i32_1 = arith.constant 0 : i32
    return %c0_i32, %c0_i32_0 : i32, i32
  }
  func.func @transform_3(%arg0: i32) -> (i32, i32, i32) {
    %c0_i32 = arith.constant 0 : i32
    %c0_i32_0 = arith.constant 0 : i32
    %c0_i32_1 = arith.constant 0 : i32
    return %arg0, %c0_i32, %c0_i32_0 : i32, i32, i32
  }
}

</mosaic_0001>

<llo_original>
// kernel: tpu_custom_call.1
$region0: #{tpu_custom_call.1}
  #allocation0 [shape = 'u32[]', space=smem, size = 0x4, offset = 0x4, fixed_abs, tag = 'smem constant byte address 0x4 - core index']
  #allocation1 [shape = 'u32[144,128]{1,0:T(1,128)}', space=vmem, size = 0x12000, scoped, tag = 'internal scratch']
  %s0 = inlined_call_operand.hbm [shape: f32[2,4,256], index: 0, kind: input, shape index: {}]
  %s1 = inlined_call_operand.vmem [shape: f32[4,1], index: 1, kind: input, shape index: {}]
  %s2 = inlined_call_operand.vmem [shape: f32[4,1], index: 2, kind: input, shape index: {}]
  %s3 = inlined_call_operand.hbm [shape: f32[2,4,256], index: 3, kind: output, shape index: {}]
  %s4 = sld [smem:[#allocation0]]
  $region49: #{tpu_custom_call.1} parent=0
    _
  %s6 = ssub.s32 1, %s4
  %s7 = scalar_select 0, %s6, %s4
  $region1: #{tpu_custom_call.1} parent=0
    #allocation2 [shape = 'u8[8192]{0}', space=vmem, size = 0x2000, scoped, tag = 'input window, operand 0']
    #allocation3 [shape = 's32[2]{0}', space=sflag, size = 0x8, scoped, tag = 'scoped memory for tpu_custom_call.1']
    #allocation4 [shape = 's32[2]{0}', space=sflag, size = 0x8, scoped, tag = 'scoped memory for tpu_custom_call.1']
    #allocation5 [shape = 'u8[8192]{0}', space=vmem, size = 0x2000, scoped, tag = 'output window, operand 0']
    %8 = vsyncpa [#allocation3], 0
    %s9 = scalar_lea.sflag [#allocation3], 1
    %10 = vsyncpa %s9, 0
    %11 = vsyncpa [#allocation4], 0
    %s12 = scalar_lea.sflag [#allocation4], 1
    %13 = vsyncpa %s12, 0
    loop: start=0, step=1, limit=4
    $region2: #{tpu_custom_call.1} parent=1 // loop_pre_header
      _
    $region3: #{tpu_custom_call.1} parent=1 // loop_header
      %s15 = sphi 0, %s19
      %p16 = scmp.ge.s32.totalorder %s15, 4
      %s25 = sphi 0, %s27
      %s28 = sphi 0, %s25
      %s29 = sphi 0, %s28
      %s45 = sphi 0, %s29
      %s49 = sphi 0, %s49
      %s51 = sphi 0, %s49
      %s52 = sphi 0, %s51
      %s66 = sphi 0, %s52
      %s70 = sphi 0, %s70
      %s72 = sphi 0, %s70
      %s73 = sphi 0, %s72
      %s87 = sphi 0, %s73
      %s93 = sphi 0, %s95
      %s96 = sphi 0, %s93
      %s97 = sphi 0, %s96
      %s113 = sphi 0, %s97
    $region4: #{tpu_custom_call.1} parent=1 // loop_header_branch
      %18 = sbr.rel (%p16) target = $region8
    $region5: #{tpu_custom_call.1} parent=1 // loop_body
      %s20 = ssub.s32 %s15, 1
      %s21 = ssub.s32 %s15, 2
      %s22 = sadd.s32 %s15, 1
      %s23 = ssub.s32 %s15, %s22
      %p24 = scmp.eq.s32.totalorder %s23, 0
      %s26 = sadd.s32 %s25, 1
      %s27 = scalar_select %p24, %s25, %s26
      %p30 = pneg %p24
      %p31 = scmp.eq.s32.totalorder %s15, 1
      %p32 = por %p30, %p31
      %p33 = scmp.ne.s32.totalorder %s25, %s28
      %p34 = scmp.eq.s32.totalorder %s15, 0
      %p35 = por %p33, %p34
      %p36 = scmp.ne.s32.totalorder %s25, %s28
      %p37 = scmp.eq.s32.totalorder %s20, 1
      %p38 = por %p36, %p37
      %p39 = scmp.ne.s32.totalorder %s28, %s29
      %p40 = scmp.eq.s32.totalorder %s20, 0
      %p41 = por %p39, %p40
      %p42 = scmp.ne.s32.totalorder %s28, %s29
      %p43 = scmp.eq.s32.totalorder %s21, 1
      %p44 = por %p42, %p43
      %p46 = scmp.ne.s32.totalorder %s29, %s45
      %p47 = scmp.eq.s32.totalorder %s21, 0
      %p48 = por %p46, %p47
      %s50 = sadd.s32 %s49, 1
      %p53 = scmp.eq.s32.totalorder %s15, 1
      %p54 = scmp.ne.s32.totalorder %s49, %s51
      %p55 = scmp.eq.s32.totalorder %s15, 0
      %p56 = por %p54, %p55
      %p57 = scmp.ne.s32.totalorder %s49, %s51
      %p58 = scmp.eq.s32.totalorder %s20, 1
      %p59 = por %p57, %p58
      %p60 = scmp.ne.s32.totalorder %s51, %s52
      %p61 = scmp.eq.s32.totalorder %s20, 0
      %p62 = por %p60, %p61
      %p63 = scmp.ne.s32.totalorder %s51, %s52
      %p64 = scmp.eq.s32.totalorder %s21, 1
      %p65 = por %p63, %p64
      %p67 = scmp.ne.s32.totalorder %s52, %s66
      %p68 = scmp.eq.s32.totalorder %s21, 0
      %p69 = por %p67, %p68
      %s71 = sadd.s32 %s70, 1
      %p74 = scmp.eq.s32.totalorder %s15, 1
      %p75 = scmp.ne.s32.totalorder %s70, %s72
      %p76 = scmp.eq.s32.totalorder %s15, 0
      %p77 = por %p75, %p76
      %p78 = scmp.ne.s32.totalorder %s70, %s72
      %p79 = scmp.eq.s32.totalorder %s20, 1
      %p80 = por %p78, %p79
      %p81 = scmp.ne.s32.totalorder %s72, %s73
      %p82 = scmp.eq.s32.totalorder %s20, 0
      %p83 = por %p81, %p82
      %p84 = scmp.ne.s32.totalorder %s72, %s73
      %p85 = scmp.eq.s32.totalorder %s21, 1
      %p86 = por %p84, %p85
      %p88 = scmp.ne.s32.totalorder %s73, %s87
      %p89 = scmp.eq.s32.totalorder %s21, 0
      %p90 = por %p88, %p89
      %s91 = ssub.s32 %s15, %s22
      %p92 = scmp.eq.s32.totalorder %s91, 0
      %s94 = sadd.s32 %s93, 1
      %s95 = scalar_select %p92, %s93, %s94
      %p98 = pneg %p92
      %p99 = scmp.eq.s32.totalorder %s15, 1
      %p100 = por %p98, %p99
      %p101 = scmp.ne.s32.totalorder %s93, %s96
      %p102 = scmp.eq.s32.totalorder %s15, 0
      %p103 = por %p101, %p102
      %p104 = scmp.ne.s32.totalorder %s93, %s96
      %p105 = scmp.eq.s32.totalorder %s20, 1
      %p106 = por %p104, %p105
      %p107 = scmp.ne.s32.totalorder %s96, %s97
      %p108 = scmp.eq.s32.totalorder %s20, 0
      %p109 = por %p107, %p108
      %p110 = scmp.ne.s32.totalorder %s96, %s97
      %p111 = scmp.eq.s32.totalorder %s21, 1
      %p112 = por %p110, %p111
      %p114 = scmp.ne.s32.totalorder %s97, %s113
      %p115 = scmp.eq.s32.totalorder %s21, 0
      %p116 = por %p114, %p115
      %p117 = scmp.le.s32.totalorder 1, %s15
      %p118 = scmp.lt.s32.totalorder %s15, 3
      %p119 = pnand %p117, %p118
      %p120 = pneg %p119
      // Predicated region
      $region9: #{tpu_custom_call.1} parent=5 // pred_check
        _
      $region10: #{tpu_custom_call.1} parent=5 // pred_check_branch
        %122 = sbr.rel (%p119) target = $region12
      $region11: #{tpu_custom_call.1} parent=5 // pred_region
        %s123 = ssub.s32 %s15, 1
        // Predicated region
        $region13: #{tpu_custom_call.1} parent=11 // pred_check
          %p124 = pneg %p62
        $region14: #{tpu_custom_call.1} parent=11 // pred_check_branch
          %126 = sbr.rel (%p124) target = $region16
        $region15: #{tpu_custom_call.1} parent=11 // pred_region
          _
        $region16: #{tpu_custom_call.1} parent=11 // pred_fallthru
          _
        // Predicated region
        $region17: #{tpu_custom_call.1} parent=11 // pred_check
          %p127 = pneg %p83
        $region18: #{tpu_custom_call.1} parent=11 // pred_check_branch
          %129 = sbr.rel (%p127) target = $region20
        $region19: #{tpu_custom_call.1} parent=11 // pred_region
          _
        $region20: #{tpu_custom_call.1} parent=11 // pred_fallthru
          _
      $region12: #{tpu_custom_call.1} parent=5 // pred_fallthru
        _
      %p130 = scmp.lt.s32.totalorder %s15, 2
      // Predicated region
      $region21: #{tpu_custom_call.1} parent=5 // pred_check
        %p131 = pneg %p130
      $region22: #{tpu_custom_call.1} parent=5 // pred_check_branch
        %133 = sbr.rel (%p131) target = $region24
      $region23: #{tpu_custom_call.1} parent=5 // pred_region
        // Predicated region
        $region25: #{tpu_custom_call.1} parent=23 // pred_check
          %p134 = pneg %p35
        $region26: #{tpu_custom_call.1} parent=23 // pred_check_branch
          %136 = sbr.rel (%p134) target = $region28
        $region27: #{tpu_custom_call.1} parent=23 // pred_region
          %s137 = sand.u32 %s25, 1
          %s138 = scalar_lea.sflag [#allocation3], %s137
          %s139 = sand.u32 %s25, 1
          %s140 = smul.addr %s139, 8
          %s141 = scalar_lea.vmem [#allocation2], %s140
          %s143 = ssub.s32 128, 128
          %144 = vsyncadd %s138, %s143
          %s145 = smul.addr %s15, 2
          %s146 = smul.addr %s145, 64
          %s147 = scalar_lea.hbm %s0, %s146
          %s149 = sshll.u32 %s141, 4
          %s150 = int_to_ptr.vmem [resolvable:$true] %s149
          %152 = dma.hbm_to_vmem [thread:$0]  %s147, 128, %s150, %s138
        $region28: #{tpu_custom_call.1} parent=23 // pred_fallthru
          _
      $region24: #{tpu_custom_call.1} parent=5 // pred_fallthru
        _
      %p153 = scmp.le.s32.totalorder 1, %s15
      %p154 = scmp.lt.s32.totalorder %s15, 3
      %p155 = pnand %p153, %p154
      %p156 = pneg %p155
      // Predicated region
      $region29: #{tpu_custom_call.1} parent=5 // pred_check
        _
      $region30: #{tpu_custom_call.1} parent=5 // pred_check_branch
        %158 = sbr.rel (%p155) target = $region32
      $region31: #{tpu_custom_call.1} parent=5 // pred_region
        %s159 = ssub.s32 %s15, 1
        %s160 = sand.u32 %s28, 1
        %s161 = scalar_lea.sflag [#allocation3], %s160
        %s162 = sand.u32 %s28, 1
        %s163 = smul.addr %s162, 8
        %s164 = scalar_lea.vmem [#allocation2], %s163
        // Predicated region
        $region33: #{tpu_custom_call.1} parent=31 // pred_check
          %p165 = pneg %p41
        $region34: #{tpu_custom_call.1} parent=31 // pred_check_branch
          %167 = sbr.rel (%p165) target = $region36
        $region35: #{tpu_custom_call.1} parent=31 // pred_region
          %168 = dma.done %s161, 128
        $region36: #{tpu_custom_call.1} parent=31 // pred_fallthru
          _
        %s169 = sand.u32 %s28, 1
        %s170 = scalar_lea.sflag [#allocation3], %s169
        %s171 = sand.u32 %s28, 1
        %s172 = smul.addr %s171, 8
        %s173 = scalar_lea.vmem [#allocation2], %s172
        %p174 = pneg %p41
        %p175 = pneg %p38
        %p176 = pneg %p62
        %p177 = pneg %p59
        %p178 = pneg %p83
        %p179 = pneg %p80
        %p180 = pneg %p109
        %p181 = pneg %p106
        %s182 = sand.u32 %s96, 1
        %s183 = scalar_lea.sflag [#allocation4], %s182
        %s184 = sand.u32 %s96, 1
        %s185 = smul.addr %s184, 8
        %s186 = scalar_lea.vmem [#allocation5], %s185
        %v187 = vld [vmem:[%s164] sm:$0xff]
        %v189 = vcombine.high %v187, %v187
        %vm191 = vcmask 1043456
        %v192 = vsel %vm191, %v187, 0.0
        %v193 = vsel %vm191, %v189, 0.0
        %v194 = vadd.f32 %v192, %v193
        %195 = vadd.xlane.f32.xlu0 %v194
        %v196 = vpop.xlane.xlu0 %195
        %v197 = vmul.f32 %v187, %v187
        %v199 = vcombine.high %v197, %v197
        %v201 = vsel %vm191, %v197, 0.0
        %v202 = vsel %vm191, %v199, 0.0
        %v203 = vadd.f32 %v201, %v202
        %204 = vadd.xlane.f32.xlu0 %v203
        %v205 = vpop.xlane.xlu0 %204
        %v206 = vadd.f32 %v196, 0.0
        %v207 = vadd.f32 %v205, 0.0
        %v208 = vmul.f32 %v206, 0.00390625
        %v209 = vmul.f32 %v206, %v208
        %v210 = vsub.f32 %v207, %v209
        %v211 = vmax.f32 %v210, 0.0
        %v212 = vmul.f32 %v211, 0.003921569
        %v213 = vadd.f32 %v212, 1e-05
        %v214 = vrsqrt.pop %v213
        %v215 = vld [vmem:[%s1] sm:$0xf]
        %v216 = vld [vmem:[%s2] sm:$0xf]
        %v217 = vmul.f32 %v214, %v215
        %v218 = vmul.f32 %v208, %v217
        %v219 = vsub.f32 %v216, %v218
        %221 = vset.pattern.permute.xlu0 0
        %222 = vperm.xlu0 %221, %v217
        %v223 = vpop.permute.xlu0 %222
        %v225 = vunpack.c.l.s4 839922192
        %v226 = vunpack.c.0.s8 %v225
        %v227 = vlaneseq
        %v228 = vshrl.u32 %v227, 7
        %v229 = vsub.s32 %v226, %v228
        %v230 = vrot.slane %v223, %v229
        %v232 = vmul.f32 %v187, %v230
        %234 = vset.pattern.permute.xlu0 0
        %235 = vperm.xlu0 %234, %v219
        %v236 = vpop.permute.xlu0 %235
        %v238 = vunpack.c.l.s4 839922192
        %v239 = vunpack.c.0.s8 %v238
        %v240 = vlaneseq
        %v241 = vshrl.u32 %v240, 7
        %v242 = vsub.s32 %v239, %v241
        %v243 = vrot.slane %v236, %v242
        %v245 = vadd.f32 %v232, %v243
        %246 = vst [vmem:[%s186] sm:$0xff] %v245
        %s247 = sand.u32 %s96, 1
        %s248 = scalar_lea.sflag [#allocation4], %s247
        %s249 = sand.u32 %s96, 1
        %s250 = smul.addr %s249, 8
        %s251 = scalar_lea.vmem [#allocation5], %s250
        // Predicated region
        $region37: #{tpu_custom_call.1} parent=31 // pred_check
          %p252 = pneg %p106
        $region38: #{tpu_custom_call.1} parent=31 // pred_check_branch
          %254 = sbr.rel (%p252) target = $region40
        $region39: #{tpu_custom_call.1} parent=31 // pred_region
          %s256 = ssub.s32 128, 128
          %257 = vsyncadd %s248, %s256
          %s258 = smul.addr %s20, 2
          %s259 = smul.addr %s258, 64
          %s260 = scalar_lea.hbm %s3, %s259
          %s262 = sshll.u32 %s251, 4
          %s263 = int_to_ptr.vmem [resolvable:$true] %s262
          %265 = dma.vmem_to_hbm [thread:$0]  %s263, 128, %s260, %s248
        $region40: #{tpu_custom_call.1} parent=31 // pred_fallthru
          _
      $region32: #{tpu_custom_call.1} parent=5 // pred_fallthru
        _
      %p266 = scmp.le.s32.totalorder 2, %s15
      // Predicated region
      $region41: #{tpu_custom_call.1} parent=5 // pred_check
        %p267 = pneg %p266
      $region42: #{tpu_custom_call.1} parent=5 // pred_check_branch
        %269 = sbr.rel (%p267) target = $region44
      $region43: #{tpu_custom_call.1} parent=5 // pred_region
        %s270 = ssub.s32 %s15, 2
        // Predicated region
        $region45: #{tpu_custom_call.1} parent=43 // pred_check
          %p271 = pneg %p112
        $region46: #{tpu_custom_call.1} parent=43 // pred_check_branch
          %273 = sbr.rel (%p271) target = $region48
        $region47: #{tpu_custom_call.1} parent=43 // pred_region
          %s274 = sand.u32 %s97, 1
          %s275 = scalar_lea.sflag [#allocation4], %s274
          %s276 = sand.u32 %s97, 1
          %s277 = smul.addr %s276, 8
          %s278 = scalar_lea.vmem [#allocation5], %s277
          %279 = dma.done %s275, 128
        $region48: #{tpu_custom_call.1} parent=43 // pred_fallthru
          _
      $region44: #{tpu_custom_call.1} parent=5 // pred_fallthru
        _
    $region6: #{tpu_custom_call.1} parent=1 // loop_footer
      %s19 = sadd.s32 1, %s15
    $region7: #{tpu_custom_call.1} parent=1 // loop_footer_branch
      %14 = sbr.rel target = $region3
    $region8: #{tpu_custom_call.1} parent=1 // loop_exit
      _
    %280 = vsyncpa [#allocation3], 1
    %s281 = scalar_lea.sflag [#allocation3], 1
    %282 = vsyncpa %s281, 1
    %283 = vsyncpa [#allocation4], 1
    %s284 = scalar_lea.sflag [#allocation4], 1
    %285 = vsyncpa %s284, 1

</llo_original>
